<compile_context>
chip_gen: v6e
topology: v6e:2x2x1
jax: 0.10.0
libtpu: 0.0.40
codegen_flags: <defaults>
</compile_context>

<pallas_src>
import functools

import jax
import jax.numpy as jnp
from jax.experimental import pallas as pl
from jax.experimental.pallas import tpu as pltpu

MARGIN = 1.0
EPS = 1e-6  # PyTorch pairwise_distance default eps


def _round_up(x, m):
    return ((x + m - 1) // m) * m


def _vmem_capacity_bytes():
    """Physical VMEM bytes for this generation (conservative fallback)."""
    try:
        info = pltpu.get_tpu_info()
        for name in ("vmem_capacity_bytes", "vmem_size_bytes", "vmem_bytes"):
            v = getattr(info, name, None)
            if v:
                return int(v)
    except Exception:
        pass
    return 64 << 20  # v7x physical VMEM; safe lower bound everywhere


def _choose_tile_rows(B, D, itemsize, sub_mult, phys_vmem):
    """Batch tile so 2 inputs x 2 pipeline buffers hit the DMA sweet spot."""
    budget = min(phys_vmem // 4, 32 << 20)      # 16 MiB on v7x, 32 MiB v5e/v6e
    lane_pad = _round_up(max(D, 1), 128)        # VMEM rows are lane-padded
    per_block = max(1, budget // 4)             # 2 inputs x 2 buffers
    tb = per_block // max(1, lane_pad * itemsize)
    tb = max(sub_mult, min(4096, tb))
    tb = (tb // sub_mult) * sub_mult
    if tb >= B:
        return B                                # full-extent block is legal
    return tb


def _contrastive_kernel(x1_ref, x2_ref, label_ref, out_ref, *,
                        total_rows, tile_rows, margin,
                        needs_mask, label_resident):
    i = pl.program_id(0)

    # Upcast after the (possibly bf16) load; all math in f32.
    x1 = x1_ref[...].astype(jnp.float32)
    x2 = x2_ref[...].astype(jnp.float32)
    diff = x1 - x2 + EPS                                     # (TB, D)  VPU

    # Squared L2 per row (lane reduction on the XLU), sqrt on the EUP.
    d2 = jnp.sum(diff * diff, axis=-1, keepdims=True)        # (TB, 1)
    d = jnp.sqrt(d2)

    if label_resident:
        start = pl.multiple_of(i * tile_rows, tile_rows)
        label = label_ref[pl.ds(start, tile_rows), :]
    else:
        label = label_ref[...]
    label = label.astype(jnp.float32)                        # (TB, 1)

    hinge = jnp.maximum(margin - d, 0.0)
    per_example = (1.0 - label) * d2 + label * (hinge * hinge)

    if needs_mask:
        last = pl.num_programs(0) - 1

        @pl.when(i < last)
        def _():
            out_ref[0, 0] = jnp.sum(per_example)

        @pl.when(i == last)
        def _():
            # Only the final (partial) tile pays for the mask.
            row = jax.lax.broadcasted_iota(jnp.int32, per_example.shape, 0)
            valid = (row + i * tile_rows) < total_rows
            out_ref[0, 0] = jnp.sum(jnp.where(valid, per_example, 0.0))
    else:
        out_ref[0, 0] = jnp.sum(per_example)


def contrastive_loss(output1, output2, label, *, margin=MARGIN,
                     tile_rows=None, resident_label_max_rows=8192):
    B, D = output1.shape
    assert output2.shape == (B, D)
    itemsize = jnp.dtype(output1.dtype).itemsize
    sub_mult = max(8, 32 // itemsize)           # sublane packing: f32/bf16/int8
    phys_vmem = _vmem_capacity_bytes()

    if tile_rows is None:
        tb = _choose_tile_rows(B, D, itemsize, sub_mult, phys_vmem)
    else:
        tb = int(tile_rows)
        if tb >= B:
            tb = B
        else:
            tb = max(sub_mult, (tb // sub_mult) * sub_mult)

    num_tiles = pl.cdiv(B, tb)
    needs_mask = (B % tb) != 0

    label2d = label.reshape(B, 1).astype(jnp.float32)

    padded_rows = num_tiles * tb
    label_resident = padded_rows <= resident_label_max_rows
    if label_resident:
        # Whole label vector resident in VMEM (one DMA total); pad so the
        # per-tile slice never runs out of bounds (padding is masked anyway).
        if padded_rows > B:
            label2d = jnp.pad(label2d, ((0, padded_rows - B), (0, 0)))
        label_spec = pl.BlockSpec((padded_rows, 1), lambda i: (0, 0))
        label_vmem = padded_rows * 128 * 4
    else:
        label_spec = pl.BlockSpec((tb, 1), lambda i: (i, 0))
        label_vmem = 4 * tb * 128 * 4

    # VMEM accounting (lane-padded) -> vmem_limit_bytes for the compiler.
    lane_pad = _round_up(D, 128)
    block_vmem = tb * lane_pad * itemsize
    needed = 4 * block_vmem + label_vmem + (2 << 20)
    vmem_limit = int(min((phys_vmem * 3) // 4, max(needed, 16 << 20)))

    kernel = functools.partial(
        _contrastive_kernel,
        total_rows=B, tile_rows=tb, margin=float(margin),
        needs_mask=needs_mask, label_resident=label_resident)

    cost = pl.CostEstimate(
        flops=4 * B * D + 8 * B,
        transcendentals=B,
        bytes_accessed=2 * B * D * itemsize + B * 4 + num_tiles * 4)

    partials = pl.pallas_call(
        kernel,
        out_shape=jax.ShapeDtypeStruct((1, num_tiles), jnp.float32),
        grid=(num_tiles,),
        in_specs=[
            pl.BlockSpec((tb, D), lambda i: (i, 0)),
            pl.BlockSpec((tb, D), lambda i: (i, 0)),
            label_spec,
        ],
        out_specs=pl.BlockSpec((1, 1), lambda i: (0, i),
                               memory_space=pltpu.MemorySpace.SMEM),
        compiler_params=pltpu.CompilerParams(
            dimension_semantics=("parallel",),
            vmem_limit_bytes=vmem_limit),
        cost_estimate=cost,
    )(output1, output2, label2d)

    # Tiny final reduction + mean in plain JAX.
    return jnp.sum(partials) / jnp.float32(B)


def contrastive_loss_ref(output1, output2, label, margin=MARGIN):
    o1 = output1.astype(jnp.float32)
    o2 = output2.astype(jnp.float32)
    d = jnp.sqrt(jnp.sum((o1 - o2 + EPS) ** 2, axis=-1))
    return jnp.mean((1.0 - label) * d ** 2 +
                    label * jnp.maximum(margin - d, 0.0) ** 2)


if __name__ == "__main__":
    key = jax.random.PRNGKey(0)
    k1, k2, k3 = jax.random.split(key, 3)

    # Small shapes consistent with the module (batch=8, hidden=32), f32.
    B, D = 8, 32
    output1 = jax.random.normal(k1, (B, D), dtype=jnp.float32)
    output2 = jax.random.normal(k2, (B, D), dtype=jnp.float32)
    label = jax.random.bernoulli(k3, 0.5, (B,)).astype(jnp.float32)

    loss = jax.block_until_ready(contrastive_loss(output1, output2, label))
    ref = contrastive_loss_ref(output1, output2, label)
    assert jnp.allclose(loss, ref, rtol=1e-5, atol=1e-5), (loss, ref)

    # Batch tiling, partial (masked) last tile, native-bf16 inputs,
    # resident-label path.
    k4, k5, k6 = jax.random.split(k3, 3)
    B2, D2 = 300, 256
    o1 = jax.random.normal(k4, (B2, D2), dtype=jnp.float32).astype(jnp.bfloat16)
    o2 = jax.random.normal(k5, (B2, D2), dtype=jnp.float32).astype(jnp.bfloat16)
    lbl = jax.random.bernoulli(k6, 0.5, (B2,)).astype(jnp.float32)

    loss2 = jax.block_until_ready(contrastive_loss(o1, o2, lbl, tile_rows=128))
    ref2 = contrastive_loss_ref(o1, o2, lbl)
    assert jnp.allclose(loss2, ref2, rtol=1e-4, atol=1e-4), (loss2, ref2)

    # Force the per-tile label fallback path + masking with f32 inputs.
    k7, k8, k9 = jax.random.split(k6, 3)
    B3, D3 = 200, 160
    p1 = jax.random.normal(k7, (B3, D3), dtype=jnp.float32)
    p2 = jax.random.normal(k8, (B3, D3), dtype=jnp.float32)
    lbl3 = jax.random.bernoulli(k9, 0.5, (B3,)).astype(jnp.float32)

    loss3 = jax.block_until_ready(
        contrastive_loss(p1, p2, lbl3, tile_rows=32, resident_label_max_rows=0))
    ref3 = contrastive_loss_ref(p1, p2, lbl3)
    assert jnp.allclose(loss3, ref3, rtol=1e-5, atol=1e-5), (loss3, ref3)

    print("KERNEL_OK")
</pallas_src>

<mosaic_0001>
module attributes {stable_mosaic.version = 11 : i64} {
  func.func @_contrastive_kernel(%arg0: i32, %arg1: memref<8x32xf32, #tpu.memory_space<vmem>>, %arg2: memref<8x32xf32, #tpu.memory_space<vmem>>, %arg3: memref<8x1xf32, #tpu.memory_space<vmem>>, %arg4: memref<1x1xf32, #tpu.memory_space<smem>>) attributes {dimension_semantics = [#tpu.dimension_semantics<parallel>], iteration_bounds = array<i64: 1>, scalar_prefetch = 0 : i64, scratch_operands = 0 : i64, tpu.core_type = #tpu.core_type<tc>, window_params = [{transform_indices = @transform_0, window_bounds = array<i64: 8, 32>}, {transform_indices = @transform_1, window_bounds = array<i64: 8, 32>}, {pipeline_mode = #tpu.pipeline_mode<synchronous>, transform_indices = @transform_2, window_bounds = array<i64: 8, 1>}, {transform_indices = @transform_3, window_bounds = array<i64: 1, 1>}]} {
    %c0 = arith.constant 0 : index
    %c0_0 = arith.constant 0 : index
    %0 = vector.load %arg1[%c0, %c0_0] : memref<8x32xf32, #tpu.memory_space<vmem>>, vector<8x32xf32>
    %c0_1 = arith.constant 0 : index
    %c0_2 = arith.constant 0 : index
    %1 = vector.load %arg2[%c0_1, %c0_2] : memref<8x32xf32, #tpu.memory_space<vmem>>, vector<8x32xf32>
    %2 = arith.subf %0, %1 : vector<8x32xf32>
    %cst = arith.constant 9.99999997E-7 : f32
    %3 = vector.broadcast %cst : f32 to vector<8x32xf32>
    %4 = arith.addf %2, %3 : vector<8x32xf32>
    %5 = arith.mulf %4, %4 : vector<8x32xf32>
    %cst_3 = arith.constant dense<0.000000e+00> : vector<8xf32>
    %6 = vector.multi_reduction <add>, %5, %cst_3 [1] : vector<8x32xf32> to vector<8xf32>
    %7 = vector.shape_cast %6 : vector<8xf32> to vector<8x1xf32>
    %8 = math.sqrt %7 : vector<8x1xf32>
    %c8_i32 = arith.constant 8 : i32
    %9 = arith.muli %arg0, %c8_i32 : i32
    %10 = tpu.assume_multiple %9, 8 : i32
    %11 = arith.index_cast %10 : i32 to index
    %c0_4 = arith.constant 0 : index
    %12 = vector.load %arg3[%11, %c0_4] : memref<8x1xf32, #tpu.memory_space<vmem>>, vector<8x1xf32>
    %cst_5 = arith.constant 1.000000e+00 : f32
    %13 = vector.broadcast %cst_5 : f32 to vector<8x1xf32>
    %14 = arith.subf %13, %8 : vector<8x1xf32>
    %cst_6 = arith.constant 0.000000e+00 : f32
    %15 = vector.broadcast %cst_6 : f32 to vector<8x1xf32>
    %16 = arith.maximumf %14, %15 : vector<8x1xf32>
    %cst_7 = arith.constant 1.000000e+00 : f32
    %17 = vector.broadcast %cst_7 : f32 to vector<8x1xf32>
    %18 = arith.subf %17, %12 : vector<8x1xf32>
    %19 = arith.mulf %18, %7 : vector<8x1xf32>
    %20 = arith.mulf %16, %16 : vector<8x1xf32>
    %21 = arith.mulf %12, %20 : vector<8x1xf32>
    %22 = arith.addf %19, %21 : vector<8x1xf32>
    %23 = vector.shape_cast %22 : vector<8x1xf32> to vector<1x8x1xf32>
    %cst_8 = arith.constant dense<0.000000e+00> : vector<1xf32>
    %24 = vector.multi_reduction <add>, %23, %cst_8 [1, 2] : vector<1x8x1xf32> to vector<1xf32>
    %25 = vector.shape_cast %24 : vector<1xf32> to vector<1x1x1xf32>
    %26 = vector.extract %25[0, 0, 0] : f32 from vector<1x1x1xf32>
    %c0_9 = arith.constant 0 : index
    %c0_10 = arith.constant 0 : index
    %27 = memref.load %arg4[%c0_9, %c0_10] : memref<1x1xf32, #tpu.memory_space<smem>>
    memref.store %26, %arg4[%c0_9, %c0_10] : memref<1x1xf32, #tpu.memory_space<smem>>
    return
  }
  func.func @transform_0(%arg0: i32) -> (i32, i32) {
    %c0_i32 = arith.constant 0 : i32
    %c0_i32_0 = arith.constant 0 : i32
    return %arg0, %c0_i32 : i32, i32
  }
  func.func @transform_1(%arg0: i32) -> (i32, i32) {
    %c0_i32 = arith.constant 0 : i32
    %c0_i32_0 = arith.constant 0 : i32
    return %arg0, %c0_i32 : i32, i32
  }
  func.func @transform_2(%arg0: i32) -> (i32, i32) {
    %c0_i32 = arith.constant 0 : i32
    %c0_i32_0 = arith.constant 0 : i32
    %c0_i32_1 = arith.constant 0 : i32
    return %c0_i32, %c0_i32_0 : i32, i32
  }
  func.func @transform_3(%arg0: i32) -> (i32, i32) {
    %c0_i32 = arith.constant 0 : i32
    %c0_i32_0 = arith.constant 0 : i32
    return %c0_i32, %arg0 : i32, i32
  }
}

</mosaic_0001>

<llo_original>
// kernel: tpu_custom_call.1
$region0: #{tpu_custom_call.1}
  #allocation0 [shape = 'u32[]', space=smem, size = 0x4, offset = 0x4, fixed_abs, tag = 'smem constant byte address 0x4 - core index']
  #allocation1 [shape = 'u32[144,128]{1,0:T(1,128)}', space=vmem, size = 0x12000, scoped, tag = 'internal scratch']
  %s0 = inlined_call_operand.vmem [shape: f32[8,32], index: 0, kind: input, shape index: {}]
  %s1 = inlined_call_operand.hbm [shape: f32[8,32], index: 1, kind: input, shape index: {}]
  %s2 = inlined_call_operand.vmem [shape: f32[8,1], index: 2, kind: input, shape index: {}]
  %s3 = inlined_call_operand.hbm [shape: f32[1,1], index: 3, kind: output, shape index: {}]
  %s4 = sld [smem:[#allocation0]]
  $region26: #{tpu_custom_call.1} parent=0
    _
  %s6 = ssub.s32 1, %s4
  %s7 = scalar_select 0, %s6, %s4
  $region1: #{tpu_custom_call.1} parent=0
    #allocation2 [shape = 'u8[4096]{0}', space=vmem, size = 0x1000, scoped, tag = 'input window, operand 1, single buffered']
    #allocation3 [shape = 's32[1]{0}', space=sflag, size = 0x4, scoped, tag = 'scoped memory for tpu_custom_call.1']
    #allocation4 [shape = 's32[1]{0}', space=sflag, size = 0x4, scoped, tag = 'scoped memory for tpu_custom_call.1']
    #allocation5 [shape = 'u8[512]{0}', space=smem, size = 0x200, scoped, tag = 'output window, operand 0, single buffered']
    %8 = vsyncpa [#allocation3], 0
    %9 = vsyncpa [#allocation4], 0
    // Predicated region
    $region2: #{tpu_custom_call.1} parent=1 // pred_check
      _
    $region3: #{tpu_custom_call.1} parent=1 // pred_check_branch
      %11 = sbr.rel (0) target = $region5
    $region4: #{tpu_custom_call.1} parent=1 // pred_region
      _
    $region5: #{tpu_custom_call.1} parent=1 // pred_fallthru
      _
    // Predicated region
    $region6: #{tpu_custom_call.1} parent=1 // pred_check
      _
    $region7: #{tpu_custom_call.1} parent=1 // pred_check_branch
      %13 = sbr.rel (0) target = $region9
    $region8: #{tpu_custom_call.1} parent=1 // pred_region
      %s15 = ssub.s32 128, 128
      %16 = vsyncadd [#allocation3], %s15
      %s18 = sshll.u32 [#allocation2], 4
      %s19 = int_to_ptr.vmem [resolvable:$true] %s18
      %21 = dma.hbm_to_vmem [thread:$0]  %s1, 128, %s19, [#allocation3]
    $region9: #{tpu_custom_call.1} parent=1 // pred_fallthru
      _
    // Predicated region
    $region10: #{tpu_custom_call.1} parent=1 // pred_check
      _
    $region11: #{tpu_custom_call.1} parent=1 // pred_check_branch
      %23 = sbr.rel (0) target = $region13
    $region12: #{tpu_custom_call.1} parent=1 // pred_region
      _
    $region13: #{tpu_custom_call.1} parent=1 // pred_fallthru
      _
    // Predicated region
    $region14: #{tpu_custom_call.1} parent=1 // pred_check
      _
    $region15: #{tpu_custom_call.1} parent=1 // pred_check_branch
      %25 = sbr.rel (0) target = $region17
    $region16: #{tpu_custom_call.1} parent=1 // pred_region
      %26 = dma.done [#allocation3], 128
    $region17: #{tpu_custom_call.1} parent=1 // pred_fallthru
      _
    %v27 = vld [vmem:[%s0] sm:$0xff]
    %v28 = vld [vmem:[#allocation2] sm:$0xff]
    %v29 = vsub.f32 %v27, %v28
    %v30 = vadd.f32 %v29, 1e-06
    %v31 = vmul.f32 %v30, %v30
    %vm32 = vcmask 261120
    %v33 = vsel %vm32, %v31, 0.0
    %34 = vadd.xlane.f32.xlu0 %v33
    %v35 = vpop.xlane.xlu0 %34
    %v36 = vrsqrt.pop %v35
    %v37 = vmul.f32 %v35, %v36
    %vm38 = vcmp.eq.f32.partialorder %v35, inf
    %v39 = vsel %vm38, %v35, %v37
    %vm40 = vcmp.eq.f32.partialorder %v35, 0.0
    %v41 = vand.u32 %v35, 2147483648
    %v42 = vsel %vm40, %v41, %v39
    %s43 = smul.u32 0, 8
    %s44 = scalar_lea.vmem %s2, %s43
    %v45 = vld [vmem:[%s44] sm:$0xff]
    %v46 = vsub.f32 1.0, %v42
    %v47 = vmax.f32 %v46, 0.0
    %v48 = vsub.f32 1.0, %v45
    %v49 = vmul.f32 %v48, %v35
    %v50 = vmul.f32 %v47, %v47
    %v51 = vmul.f32 %v45, %v50
    %v52 = vadd.f32 %v49, %v51
    %vm53 = vcmask 7168
    %v54 = vsel %vm53, %v52, 0.0
    %55 = vadd.xlane.f32.xlu0 %v54
    %v56 = vpop.xlane.xlu0 %55
    %v57 = vrot.slane %v56, 4
    %v58 = vadd.f32 %v56, %v57
    %v59 = vrot.slane %v58, 2
    %v60 = vadd.f32 %v58, %v59
    %v61 = vrot.slane %v60, 1
    %v62 = vadd.f32 %v60, %v61
    %s63 = vtos %v62
    %s64 = scalar_lea.smem [#allocation5], 0
    %65 = sst [smem:[%s64]] %s63
    // Predicated region
    $region18: #{tpu_custom_call.1} parent=1 // pred_check
      _
    $region19: #{tpu_custom_call.1} parent=1 // pred_check_branch
      %67 = sbr.rel (0) target = $region21
    $region20: #{tpu_custom_call.1} parent=1 // pred_region
      %s69 = ssub.s32 16, 16
      %70 = vsyncadd [#allocation4], %s69
      %73 = dma.smem_to_hbm [#allocation5], 16, %s3, [#allocation4]
    $region21: #{tpu_custom_call.1} parent=1 // pred_fallthru
      _
    // Predicated region
    $region22: #{tpu_custom_call.1} parent=1 // pred_check
      _
    $region23: #{tpu_custom_call.1} parent=1 // pred_check_branch
      %75 = sbr.rel (0) target = $region25
    $region24: #{tpu_custom_call.1} parent=1 // pred_region
      %76 = dma.done [#allocation4], 16
    $region25: #{tpu_custom_call.1} parent=1 // pred_fallthru
      _
    %77 = sfence
    %78 = vsyncpa [#allocation3], 1
    %79 = vsyncpa [#allocation4], 1

</llo_original>
